<compile_context>
chip_gen: v7x
topology: tpu7x:2x2x1
jax: 0.10.0
libtpu: 0.0.40
codegen_flags: <defaults>
</compile_context>

<pallas_src>
import jax
import jax.numpy as jnp
from jax.experimental import pallas as pl
from jax.experimental.pallas import tpu as pltpu


# ----------------------------------------------------------------------------
# Path A: zero-copy aliased no-op (output buffer IS the input buffer).
# ----------------------------------------------------------------------------
def _alias_noop_kernel(x_ref, o_ref):
    # Output aliases the input; the data is already in place in HBM.
    # touch() pins a read/write dependency so the call isn't elided.
    pltpu.touch(o_ref)


def _identity_alias(x: jax.Array) -> jax.Array:
    return pl.pallas_call(
        _alias_noop_kernel,
        out_shape=jax.ShapeDtypeStruct(x.shape, x.dtype),
        in_specs=[pl.BlockSpec(memory_space=pl.ANY)],
        out_specs=pl.BlockSpec(memory_space=pl.ANY),
        input_output_aliases={0: 0},
        compiler_params=pltpu.CompilerParams(has_side_effects=True),
    )(x)


# ----------------------------------------------------------------------------
# Path B: tuned HBM-roofline copy (fallback).
# ----------------------------------------------------------------------------
def _copy_kernel(x_ref, o_ref):
    # Pure pass-through: load the VMEM tile, store it. Bit-exact.
    o_ref[...] = x_ref[...]


# Lane widths tried for the lane-dense flattening (multiples of 128).
_LANE_CANDIDATES = (8192, 4096, 2048, 1024, 512, 256, 128)
# ~2 MiB per tile: (in + out) x double-buffered = 8 MiB, safe on every gen.
_TARGET_TILE_BYTES = 2 * 1024 * 1024
# Below this total size a single full-array block is cheapest (one grid step);
# 2 MiB keeps worst-case VMEM at 8 MiB even if Pallas double-buffers it (v5e).
_SINGLE_BLOCK_BYTES = 2 * 1024 * 1024


def _pick_row_tile(rows: int, row_bytes: int) -> int:
    """Row tile: ~2 MiB, multiple of 8 sublanes, preferring an exact divisor
    of `rows` so the last grid step is a full (unmasked) block."""
    tr = max(8, (_TARGET_TILE_BYTES // row_bytes) // 8 * 8)
    tr = min(tr, rows)
    if rows % tr == 0:
        return tr
    lo = max(8, (tr // 2) // 8 * 8)
    for cand in range(tr, lo - 1, -8):
        if rows % cand == 0:
            return cand
    return tr  # no nearby divisor: accept a masked tail block


def _identity_copy(x: jax.Array) -> jax.Array:
    orig_shape = x.shape
    dtype = x.dtype
    n = int(x.size)
    itemsize = jnp.dtype(dtype).itemsize
    total_bytes = n * itemsize

    lane = next((c for c in _LANE_CANDIDATES if n % c == 0), None)

    if lane is not None and n // lane > 1:
        # ---- lane-dense (rows, lane) layout, tile over rows ----------------
        rows = n // lane
        x2 = x.reshape(rows, lane)
        if total_bytes <= _SINGLE_BLOCK_BYTES:
            grid = (1,)
            block = (rows, lane)
            index_map = lambda i: (0, 0)
        else:
            tr = _pick_row_tile(rows, lane * itemsize)
            grid = (pl.cdiv(rows, tr),)      # >= 2 steps here -> both v7x TCs
            block = (tr, lane)
            index_map = lambda i: (i, 0)
    else:
        # ---- no multiple-of-128 factor (or single row): tile along lanes ---
        # Bounds VMEM to ~2 MiB per buffer regardless of n (no giant block).
        x2 = x.reshape(1, n)
        tile_elems = max(128, (_TARGET_TILE_BYTES // itemsize) // 128 * 128)
        if n <= tile_elems:
            grid = (1,)
            block = (1, n)                   # full-dim block: always legal
            index_map = lambda i: (0, 0)
        else:
            grid = (pl.cdiv(n, tile_elems),)
            block = (1, tile_elems)          # multiple of 128; tail is masked
            index_map = lambda i: (0, i)

    out2 = pl.pallas_call(
        _copy_kernel,
        out_shape=jax.ShapeDtypeStruct(x2.shape, dtype),
        grid=grid,
        in_specs=[pl.BlockSpec(block, index_map)],
        out_specs=pl.BlockSpec(block, index_map),
        compiler_params=pltpu.CompilerParams(
            dimension_semantics=("parallel",),
        ),
    )(x2)
    return out2.reshape(orig_shape)


# ----------------------------------------------------------------------------
# Public wrapper.
# ----------------------------------------------------------------------------
_ALIAS_SUPPORTED = None  # tri-state cache: None = unknown, True / False


def identity(x: jax.Array) -> jax.Array:
    """Identity forward pass (y == x: same shape/dtype/values)."""
    global _ALIAS_SUPPORTED
    if x.size == 0:
        return x
    if _ALIAS_SUPPORTED is not False:
        try:
            y = _identity_alias(x)
            _ALIAS_SUPPORTED = True
            return y
        except Exception:
            # Alias/no-op path unavailable on this stack: fall back to the
            # tuned copy kernel (note: fallback only triggers in eager mode).
            _ALIAS_SUPPORTED = False
    return _identity_copy(x)


if __name__ == "__main__":
    key = jax.random.PRNGKey(0)
    # NCHW input, small shapes consistent with a conv-backbone feature map.
    x = jax.random.normal(key, (2, 4, 16, 16), dtype=jnp.float32)

    # Default path (zero-copy alias, with automatic fallback).
    y = identity(x)
    jax.block_until_ready(y)
    assert y.shape == x.shape, f"shape mismatch: {y.shape} vs {x.shape}"
    assert y.dtype == x.dtype, f"dtype mismatch: {y.dtype} vs {x.dtype}"
    assert bool(jnp.all(y == x)), "identity output differs from input"

    # Explicitly exercise the tuned copy path (lane-dense single block).
    y2 = _identity_copy(x)
    jax.block_until_ready(y2)
    assert y2.shape == x.shape and y2.dtype == x.dtype
    assert bool(jnp.all(y2 == x)), "copy-path output differs from input"

    # Exercise the unfactorable-shape fallback (no multiple-of-128 divisor).
    x_odd = jax.random.normal(key, (3, 5, 7), dtype=jnp.float32)
    y_odd = _identity_copy(x_odd)
    jax.block_until_ready(y_odd)
    assert y_odd.shape == x_odd.shape and y_odd.dtype == x_odd.dtype
    assert bool(jnp.all(y_odd == x_odd)), "odd-shape output differs from input"

    print("KERNEL_OK")
</pallas_src>

<mosaic_0001>
module attributes {stable_mosaic.version = 11 : i64} {
  func.func @_alias_noop_kernel(%arg0: memref<2x4x16x16xf32, #tpu.memory_space<any>>, %arg1: memref<2x4x16x16xf32, #tpu.memory_space<any>>) attributes {dimension_semantics = [], scalar_prefetch = 0 : i64, scratch_operands = 0 : i64, tpu.core_type = #tpu.core_type<tc>} {
    return
  }
}

module attributes {stable_mosaic.version = 11 : i64} {
  func.func @_copy_kernel(%arg0: i32, %arg1: memref<1x2048xf32, #tpu.memory_space<vmem>>, %arg2: memref<1x2048xf32, #tpu.memory_space<vmem>>) attributes {dimension_semantics = [#tpu.dimension_semantics<parallel>], iteration_bounds = array<i64: 1>, scalar_prefetch = 0 : i64, scratch_operands = 0 : i64, tpu.core_type = #tpu.core_type<tc>, window_params = [{pipeline_mode = #tpu.pipeline_mode<synchronous>, transform_indices = @transform_0, window_bounds = array<i64: 1, 2048>}, {pipeline_mode = #tpu.pipeline_mode<synchronous>, transform_indices = @transform_1, window_bounds = array<i64: 1, 2048>}]} {
    %c0 = arith.constant 0 : index
    %c0_0 = arith.constant 0 : index
    %0 = vector.load %arg1[%c0, %c0_0] : memref<1x2048xf32, #tpu.memory_space<vmem>>, vector<1x2048xf32>
    %c0_1 = arith.constant 0 : index
    %c0_2 = arith.constant 0 : index
    %1 = vector.load %arg2[%c0_1, %c0_2] : memref<1x2048xf32, #tpu.memory_space<vmem>>, vector<1x2048xf32>
    tpu.vector_store %arg2[%c0_1, %c0_2], %0 {strides = array<i32>} : memref<1x2048xf32, #tpu.memory_space<vmem>>, vector<1x2048xf32>,
    return
  }
  func.func @transform_0(%arg0: i32) -> (i32, i32) {
    %c0_i32 = arith.constant 0 : i32
    %c0_i32_0 = arith.constant 0 : i32
    %c0_i32_1 = arith.constant 0 : i32
    return %c0_i32, %c0_i32_0 : i32, i32
  }
  func.func @transform_1(%arg0: i32) -> (i32, i32) {
    %c0_i32 = arith.constant 0 : i32
    %c0_i32_0 = arith.constant 0 : i32
    %c0_i32_1 = arith.constant 0 : i32
    return %c0_i32, %c0_i32_0 : i32, i32
  }
}

</mosaic_0001>

<llo_original>
// kernel: tpu_custom_call.1
$region0: #{tpu_custom_call.1}
  #allocation0 [shape = 'u32[]', space=smem, size = 0x4, offset = 0x4, fixed_abs, tag = 'smem constant byte address 0x4 - core index']
  #allocation1 [shape = 'u32[144,128]{1,0:T(1,128)}', space=vmem, size = 0x12000, scoped, tag = 'internal scratch']
  %s0 = inlined_call_operand.hbm [shape: f32[2,4,16,16], index: 0, kind: input, shape index: {}, may-alias: {0,1}]
  %s1 = inlined_call_operand.hbm [shape: f32[2,4,16,16], index: 1, kind: output, shape index: {}, may-alias: {0,1}]
  %s2 = sld [smem:[#allocation0]]
  $region2: #{tpu_custom_call.1} parent=0
    _
  %s4 = ssub.s32 1, %s2
  %s5 = scalar_select 0, %s4, %s2

// kernel: tpu_custom_call.1
$region0: #{tpu_custom_call.1}
  #allocation0 [shape = 'u32[]', space=smem, size = 0x4, offset = 0x4, fixed_abs, tag = 'smem constant byte address 0x4 - core index']
  #allocation1 [shape = 'u32[144,128]{1,0:T(1,128)}', space=vmem, size = 0x12000, scoped, tag = 'internal scratch']
  %s0 = inlined_call_operand.hbm [shape: f32[1,2048], index: 0, kind: input, shape index: {}]
  %s1 = inlined_call_operand.hbm [shape: f32[1,2048], index: 1, kind: output, shape index: {}]
  %s2 = sld [smem:[#allocation0]]
  $region18: #{tpu_custom_call.1} parent=0
    _
  %s4 = ssub.s32 1, %s2
  %s5 = scalar_select 0, %s4, %s2
  $region1: #{tpu_custom_call.1} parent=0
    #allocation2 [shape = 'u8[8192]{0}', space=vmem, size = 0x2000, scoped, tag = 'input window, operand 0, single buffered']
    #allocation3 [shape = 's32[1]{0}', space=sflag, size = 0x4, scoped, tag = 'scoped memory for tpu_custom_call.1']
    #allocation4 [shape = 's32[1]{0}', space=sflag, size = 0x4, scoped, tag = 'scoped memory for tpu_custom_call.1']
    #allocation5 [shape = 'u8[8192]{0}', space=vmem, size = 0x2000, scoped, tag = 'output window, operand 0, single buffered']
    %6 = vsyncpa [#allocation3], 0
    %7 = vsyncpa [#allocation4], 0
    // Predicated region
    $region2: #{tpu_custom_call.1} parent=1 // pred_check
      _
    $region3: #{tpu_custom_call.1} parent=1 // pred_check_branch
      %9 = sbr.rel (0) target = $region5
    $region4: #{tpu_custom_call.1} parent=1 // pred_region
      %s11 = ssub.s32 256, 256
      %12 = vsyncadd [#allocation3], %s11
      %s14 = sshll.u32 [#allocation2], 4
      %s15 = int_to_ptr.vmem [resolvable:$true] %s14
      %17 = dma.hbm_to_vmem [thread:$0]  %s0, 256, %s15, [#allocation3]
    $region5: #{tpu_custom_call.1} parent=1 // pred_fallthru
      _
    // Predicated region
    $region6: #{tpu_custom_call.1} parent=1 // pred_check
      _
    $region7: #{tpu_custom_call.1} parent=1 // pred_check_branch
      %19 = sbr.rel (0) target = $region9
    $region8: #{tpu_custom_call.1} parent=1 // pred_region
      %20 = dma.done [#allocation3], 256
    $region9: #{tpu_custom_call.1} parent=1 // pred_fallthru
      _
    %v21 = vld [vmem:[#allocation2] sm:$0xff]
    %v22 = vld [vmem:[#allocation2 + $0x8] sm:$0xff]
    %23 = vst [vmem:[#allocation5] sm:$0xff] %v21
    %24 = vst [vmem:[#allocation5 + $0x8] sm:$0xff] %v22
    // Predicated region
    $region10: #{tpu_custom_call.1} parent=1 // pred_check
      _
    $region11: #{tpu_custom_call.1} parent=1 // pred_check_branch
      %26 = sbr.rel (0) target = $region13
    $region12: #{tpu_custom_call.1} parent=1 // pred_region
      %s28 = ssub.s32 256, 256
      %29 = vsyncadd [#allocation4], %s28
      %s31 = sshll.u32 [#allocation5], 4
      %s32 = int_to_ptr.vmem [resolvable:$true] %s31
      %34 = dma.vmem_to_hbm [thread:$0]  %s32, 256, %s1, [#allocation4]
    $region13: #{tpu_custom_call.1} parent=1 // pred_fallthru
      _
    // Predicated region
    $region14: #{tpu_custom_call.1} parent=1 // pred_check
      _
    $region15: #{tpu_custom_call.1} parent=1 // pred_check_branch
      %36 = sbr.rel (0) target = $region17
    $region16: #{tpu_custom_call.1} parent=1 // pred_region
      %37 = dma.done [#allocation4], 256
    $region17: #{tpu_custom_call.1} parent=1 // pred_fallthru
      _
    %38 = vsyncpa [#allocation3], 1
    %39 = vsyncpa [#allocation4], 1

</llo_original>
